<compile_context>
chip_gen: v7x
topology: tpu7x:2x2x1
jax: 0.10.0
libtpu: 0.0.40
codegen_flags: <defaults>
</compile_context>

<pallas_src>
import functools

import jax
import jax.numpy as jnp
from jax.experimental import pallas as pl
from jax.experimental.pallas import tpu as pltpu


def _round_up(x, m):
    return ((x + m - 1) // m) * m


def _hamilton_kernel(dim,
                     inp_ref,
                     w1t_ref, b1_ref, w2_ref, b2_ref,        # H = myLinear
                     a1t_ref, c1_ref, a2t_ref, c2_ref,       # augment_f L1/L2
                     a3t_ref, c3_ref, uexp_ref,              # augment_f L3 chunk + u
                     out_ref,
                     hb_ref, acc_ref):
    c = pl.program_id(1)   # A3-column chunk index (reduction-style axis)

    @pl.when(c == 0)
    def _init():
        inp = inp_ref[...]                                   # (Bt, 2d) f32
        inp_bf = inp.astype(jnp.bfloat16)

        # ---- H(input) forward + closed-form dH/dinput ----------------------
        z1 = jnp.dot(inp_bf, w1t_ref[...],
                     preferred_element_type=jnp.float32) + b1_ref[...]   # (Bt, 5d)
        a1 = jnp.tanh(z1)
        w2 = w2_ref[...]                                     # (1, 5d) f32
        t = a1 * w2
        z2 = jnp.sum(t, axis=-1, keepdims=True) + b2_ref[...]            # (Bt, 1)
        h = jnp.tanh(z2)
        s = w2 - a1 * t                                      # == (1 - a1^2) * w2
        # grad[b, j] = (1 - h^2) * sum_k s[b, k] * W1[k, j]  (W1t[j, k] = W1[k, j])
        grad = (1.0 - h * h) * jax.lax.dot_general(
            s.astype(jnp.bfloat16), w1t_ref[...],
            dimension_numbers=(((1,), (1,)), ((), ())),
            preferred_element_type=jnp.float32)              # (Bt, 2d)

        out_ref[:, :dim] = grad[:, :dim]                     # dx
        acc_ref[...] = -grad[:, dim:]                        # dv accumulator init

        # ---- augment_f layers 1 & 2 (hb persists across chunk steps) -------
        x_bf = inp_bf[:, :dim]
        ha = jnp.tanh(jnp.dot(x_bf, a1t_ref[...],
                              preferred_element_type=jnp.float32) + c1_ref[...])
        hb_ref[...] = jnp.tanh(
            jnp.dot(ha.astype(jnp.bfloat16), a2t_ref[...],
                    preferred_element_type=jnp.float32) + c2_ref[...])

    # ---- augment_f layer 3 (one column chunk) fused with the u contraction --
    g = jnp.tanh(jnp.dot(hb_ref[...].astype(jnp.bfloat16), a3t_ref[...],
                         preferred_element_type=jnp.float32) + c3_ref[...])
    acc_ref[...] += jnp.dot(g.astype(jnp.bfloat16), uexp_ref[...],
                            preferred_element_type=jnp.float32)          # (Bt, d)

    @pl.when(c == pl.num_programs(1) - 1)
    def _finalize():
        out_ref[:, dim:] = acc_ref[...]                      # dv + gq @ u


def hamilton_v5_forward(params, input_, *, batch_tile=256, chunk_target=512):
    """Fused Hamilton_V5 forward as one gridded Pallas call."""
    dim = int(params["dim"])
    B = input_.shape[0]
    dd = dim * dim

    # ---- batch tiling (sublane axis, multiple of 8) -------------------------
    bt = _round_up(min(batch_tile, _round_up(B, 8)), 8)
    b_pad = _round_up(B, bt)
    nb = b_pad // bt
    x_in = input_.astype(jnp.float32)
    if b_pad != B:
        x_in = jnp.pad(x_in, ((0, b_pad - B), (0, 0)))

    # ---- A3 column (d*d) chunking: chunk is a multiple of 128 or == d*d ----
    chunk = dd if dd <= chunk_target else chunk_target
    dd_pad = _round_up(dd, chunk)
    nc = dd_pad // chunk

    # ---- weights: bf16 for matmul operands, f32 for biases / elementwise ----
    w1t = params["W1"].T.astype(jnp.bfloat16)                 # (2d, 5d)
    b1 = params["b1"][None, :].astype(jnp.float32)            # (1, 5d)
    w2 = params["W2"].astype(jnp.float32)                     # (1, 5d) elementwise only
    b2 = params["b2"][None, :].astype(jnp.float32)            # (1, 1)
    a1t = params["A1"].T.astype(jnp.bfloat16)                 # (d, 4d)
    c1 = params["c1"][None, :].astype(jnp.float32)            # (1, 4d)
    a2t = params["A2"].T.astype(jnp.bfloat16)                 # (4d, 8d)
    c2 = params["c2"][None, :].astype(jnp.float32)            # (1, 8d)
    a3t = params["A3"].T.astype(jnp.bfloat16)                 # (8d, d*d)
    c3 = params["c3"][None, :].astype(jnp.float32)            # (1, d*d)
    if dd_pad != dd:
        # tanh(hb @ 0 + 0) = 0 rows meet zero u_exp rows -> padding is inert.
        a3t = jnp.pad(a3t, ((0, 0), (0, dd_pad - dd)))
        c3 = jnp.pad(c3, ((0, 0), (0, dd_pad - dd)))

    # u_exp[i*d + j, i] = u[j]  =>  g @ u_exp == matmul(g.view(B, d, d), u)
    rows = jnp.arange(dd)
    u_exp = jnp.zeros((dd_pad, dim), jnp.float32)
    u_exp = u_exp.at[rows, rows // dim].set(
        jnp.tile(params["u"].astype(jnp.float32), dim))
    u_exp = u_exp.astype(jnp.bfloat16)

    operands = (x_in, w1t, b1, w2, b2, a1t, c1, a2t, c2, a3t, c3, u_exp)

    def resident(shape):  # weights stay VMEM-resident across all grid steps
        return pl.BlockSpec(shape, lambda b, c: (0, 0))

    grid_spec = pltpu.PrefetchScalarGridSpec(
        num_scalar_prefetch=0,
        grid=(nb, nc),
        in_specs=[
            pl.BlockSpec((bt, 2 * dim), lambda b, c: (b, 0)),      # input tile
            resident((2 * dim, 5 * dim)),                          # W1^T
            resident((1, 5 * dim)),                                # b1
            resident((1, 5 * dim)),                                # W2 row
            resident((1, 1)),                                      # b2
            resident((dim, 4 * dim)),                              # A1^T
            resident((1, 4 * dim)),                                # c1
            resident((4 * dim, 8 * dim)),                          # A2^T
            resident((1, 8 * dim)),                                # c2
            pl.BlockSpec((8 * dim, chunk), lambda b, c: (0, c)),   # A3^T chunk
            pl.BlockSpec((1, chunk), lambda b, c: (0, c)),         # c3 chunk
            pl.BlockSpec((chunk, dim), lambda b, c: (c, 0)),       # u_exp chunk
        ],
        out_specs=pl.BlockSpec((bt, 2 * dim), lambda b, c: (b, 0)),
        scratch_shapes=[
            pltpu.VMEM((bt, 8 * dim), jnp.float32),   # hb (reused across chunks)
            pltpu.VMEM((bt, dim), jnp.float32),       # dv + gu accumulator
        ],
    )

    out = pl.pallas_call(
        functools.partial(_hamilton_kernel, dim),
        out_shape=jax.ShapeDtypeStruct((b_pad, 2 * dim), jnp.float32),
        grid_spec=grid_spec,
        compiler_params=pltpu.CompilerParams(
            dimension_semantics=("parallel", "arbitrary"),
            vmem_limit_bytes=64 * 1024 * 1024,
        ),
    )(*operands)
    return out[:B]


# ---------------------------------------------------------------------------
# Deterministic parameter construction (matches nn.Linear init distributions).
# ---------------------------------------------------------------------------
def make_params(key, dim, u_scale=0.001):
    def linear(key, fan_out, fan_in):
        kw, kb = jax.random.split(key)
        bound = 1.0 / jnp.sqrt(fan_in)
        w = jax.random.uniform(kw, (fan_out, fan_in), jnp.float32, -bound, bound)
        b = jax.random.uniform(kb, (fan_out,), jnp.float32, -bound, bound)
        return w, b

    ks = jax.random.split(key, 7)
    W1, b1 = linear(ks[0], 5 * dim, 2 * dim)        # myLinear.linear1
    W2, b2 = linear(ks[1], 1, 5 * dim)              # myLinear.linear2
    A1, c1 = linear(ks[2], 4 * dim, dim)            # augment_f.linear1
    A2, c2 = linear(ks[3], 8 * dim, 4 * dim)        # augment_f.linear2
    A3, c3 = linear(ks[4], dim * dim, 8 * dim)      # augment_f.linear3
    u = jax.random.uniform(ks[5], (dim,), jnp.float32, -u_scale, u_scale)
    return dict(dim=dim, W1=W1, b1=b1, W2=W2, b2=b2,
                A1=A1, c1=c1, A2=A2, c2=c2, A3=A3, c3=c3, u=u)


# Pure-JAX reference (uses real autodiff for the Hamiltonian gradient, f32).
def reference_forward(params, input_):
    dim = params["dim"]

    def H_scalar(inp_row):
        a1 = jnp.tanh(params["W1"] @ inp_row + params["b1"])
        return jnp.tanh(params["W2"] @ a1 + params["b2"])[0]

    grad = jax.vmap(jax.grad(H_scalar))(input_)          # (B, 2d)
    dx = grad[:, :dim]
    dv = -grad[:, dim:]

    x = input_[:, :dim]
    ha = jnp.tanh(x @ params["A1"].T + params["c1"])
    hb = jnp.tanh(ha @ params["A2"].T + params["c2"])
    g = jnp.tanh(hb @ params["A3"].T + params["c3"])
    gq = g.reshape(-1, dim, dim)
    dv = dv + jnp.einsum("bij,j->bi", gq, params["u"])
    return jnp.concatenate([dx, dv], axis=-1)


if __name__ == "__main__":
    key = jax.random.PRNGKey(0)

    # Case 1: module-faithful toy shape (single grid step).
    # Case 2: exercises batch tiling (nb=3, batch padded 20->24) and A3 column
    #         chunking (d*d = 576 -> padded to 1024, nc=2); u is scaled up so
    #         the gq @ u path is numerically significant in the check.
    cases = [
        dict(dim=4, B=4, batch_tile=256, u_scale=0.001),
        dict(dim=24, B=20, batch_tile=8, u_scale=0.25),
    ]

    for cfg in cases:
        kp, kx, key = jax.random.split(key, 3)
        params = make_params(kp, cfg["dim"], u_scale=cfg["u_scale"])
        input_ = jax.random.normal(kx, (cfg["B"], 2 * cfg["dim"]), jnp.float32)

        out = hamilton_v5_forward(params, input_, batch_tile=cfg["batch_tile"])
        out = jax.block_until_ready(out)
        ref = reference_forward(params, input_)

        assert out.shape == (cfg["B"], 2 * cfg["dim"])
        # bf16 matmuls (f32 accumulation) -> loosened tolerance vs f32 reference.
        assert jnp.allclose(out, ref, atol=3e-2, rtol=3e-2), (
            cfg, float(jnp.max(jnp.abs(out - ref))))

    print("KERNEL_OK")
</pallas_src>

<mosaic_0001>
module attributes {stable_mosaic.version = 11 : i64} {
  func.func @_hamilton_kernel(%arg0: i32, %arg1: i32, %arg2: memref<8x8xf32, #tpu.memory_space<vmem>>, %arg3: memref<8x20xbf16, #tpu.memory_space<vmem>>, %arg4: memref<1x20xf32, #tpu.memory_space<vmem>>, %arg5: memref<1x20xf32, #tpu.memory_space<vmem>>, %arg6: memref<1x1xf32, #tpu.memory_space<vmem>>, %arg7: memref<4x16xbf16, #tpu.memory_space<vmem>>, %arg8: memref<1x16xf32, #tpu.memory_space<vmem>>, %arg9: memref<16x32xbf16, #tpu.memory_space<vmem>>, %arg10: memref<1x32xf32, #tpu.memory_space<vmem>>, %arg11: memref<32x16xbf16, #tpu.memory_space<vmem>>, %arg12: memref<1x16xf32, #tpu.memory_space<vmem>>, %arg13: memref<16x4xbf16, #tpu.memory_space<vmem>>, %arg14: memref<8x8xf32, #tpu.memory_space<vmem>>, %arg15: memref<8x32xf32, #tpu.memory_space<vmem>>, %arg16: memref<8x4xf32, #tpu.memory_space<vmem>>) attributes {dimension_semantics = [#tpu.dimension_semantics<parallel>, #tpu.dimension_semantics<arbitrary>], iteration_bounds = array<i64: 1, 1>, scalar_prefetch = 0 : i64, scratch_operands = 2 : i64, tpu.core_type = #tpu.core_type<tc>, window_params = [{transform_indices = @transform_0, window_bounds = array<i64: 8, 8>}, {pipeline_mode = #tpu.pipeline_mode<synchronous>, transform_indices = @transform_1, window_bounds = array<i64: 8, 20>}, {pipeline_mode = #tpu.pipeline_mode<synchronous>, transform_indices = @transform_2, window_bounds = array<i64: 1, 20>}, {pipeline_mode = #tpu.pipeline_mode<synchronous>, transform_indices = @transform_3, window_bounds = array<i64: 1, 20>}, {pipeline_mode = #tpu.pipeline_mode<synchronous>, transform_indices = @transform_4, window_bounds = array<i64: 1, 1>}, {pipeline_mode = #tpu.pipeline_mode<synchronous>, transform_indices = @transform_5, window_bounds = array<i64: 4, 16>}, {pipeline_mode = #tpu.pipeline_mode<synchronous>, transform_indices = @transform_6, window_bounds = array<i64: 1, 16>}, {pipeline_mode = #tpu.pipeline_mode<synchronous>, transform_indices = @transform_7, window_bounds = array<i64: 16, 32>}, {pipeline_mode = #tpu.pipeline_mode<synchronous>, transform_indices = @transform_8, window_bounds = array<i64: 1, 32>}, {transform_indices = @transform_9, window_bounds = array<i64: 32, 16>}, {transform_indices = @transform_10, window_bounds = array<i64: 1, 16>}, {transform_indices = @transform_11, window_bounds = array<i64: 16, 4>}, {transform_indices = @transform_12, window_bounds = array<i64: 8, 8>}]} {
    %c0_i32 = arith.constant 0 : i32
    %0 = arith.cmpi eq, %arg1, %c0_i32 : i32
    %1 = arith.extui %0 : i1 to i32
    %c0_i32_0 = arith.constant 0 : i32
    %2 = arith.cmpi ne, %1, %c0_i32_0 : i32
    scf.if %2 {
      %c0_15 = arith.constant 0 : index
      %c0_16 = arith.constant 0 : index
      %20 = vector.load %arg2[%c0_15, %c0_16] : memref<8x8xf32, #tpu.memory_space<vmem>>, vector<8x8xf32>
      %21 = arith.truncf %20 : vector<8x8xf32> to vector<8x8xbf16>
      %c0_17 = arith.constant 0 : index
      %c0_18 = arith.constant 0 : index
      %22 = vector.load %arg3[%c0_17, %c0_18] : memref<8x20xbf16, #tpu.memory_space<vmem>>, vector<8x20xbf16>
      %cst_19 = arith.constant dense<0.000000e+00> : vector<8x20xf32>
      %23 = tpu.matmul %21, %22, %cst_19 {dimension_numbers = #tpu.dot_dimension_numbers<[1], [0], [0], [1], [0, 0, 1, 1], [], []>} : vector<8x8xbf16>, vector<8x20xbf16>, vector<8x20xf32> -> vector<8x20xf32>
      %c0_20 = arith.constant 0 : index
      %c0_21 = arith.constant 0 : index
      %24 = vector.load %arg4[%c0_20, %c0_21] : memref<1x20xf32, #tpu.memory_space<vmem>>, vector<1x20xf32>
      %25 = vector.broadcast %24 : vector<1x20xf32> to vector<8x20xf32>
      %26 = arith.addf %23, %25 : vector<8x20xf32>
      %27 = math.tanh %26 : vector<8x20xf32>
      %c0_22 = arith.constant 0 : index
      %c0_23 = arith.constant 0 : index
      %28 = vector.load %arg5[%c0_22, %c0_23] : memref<1x20xf32, #tpu.memory_space<vmem>>, vector<1x20xf32>
      %29 = vector.broadcast %28 : vector<1x20xf32> to vector<8x20xf32>
      %30 = arith.mulf %27, %29 : vector<8x20xf32>
      %cst_24 = arith.constant dense<0.000000e+00> : vector<8xf32>
      %31 = vector.multi_reduction <add>, %30, %cst_24 [1] : vector<8x20xf32> to vector<8xf32>
      %32 = vector.shape_cast %31 : vector<8xf32> to vector<8x1xf32>
      %c0_25 = arith.constant 0 : index
      %c0_26 = arith.constant 0 : index
      %33 = vector.load %arg6[%c0_25, %c0_26] : memref<1x1xf32, #tpu.memory_space<vmem>>, vector<1x1xf32>
      %34 = vector.broadcast %33 : vector<1x1xf32> to vector<8x1xf32>
      %35 = arith.addf %32, %34 : vector<8x1xf32>
      %36 = math.tanh %35 : vector<8x1xf32>
      %37 = arith.mulf %27, %30 : vector<8x20xf32>
      %38 = vector.broadcast %28 : vector<1x20xf32> to vector<8x20xf32>
      %39 = arith.subf %38, %37 : vector<8x20xf32>
      %40 = arith.mulf %36, %36 : vector<8x1xf32>
      %cst_27 = arith.constant 1.000000e+00 : f32
      %41 = vector.broadcast %cst_27 : f32 to vector<8x1xf32>
      %42 = arith.subf %41, %40 : vector<8x1xf32>
      %43 = arith.truncf %39 : vector<8x20xf32> to vector<8x20xbf16>
      %c0_28 = arith.constant 0 : index
      %c0_29 = arith.constant 0 : index
      %44 = vector.load %arg3[%c0_28, %c0_29] : memref<8x20xbf16, #tpu.memory_space<vmem>>, vector<8x20xbf16>
      %cst_30 = arith.constant dense<0.000000e+00> : vector<8x8xf32>
      %45 = tpu.matmul %43, %44, %cst_30 {dimension_numbers = #tpu.dot_dimension_numbers<[1], [1], [0], [0], [0, 0, 1, 0], [], []>} : vector<8x20xbf16>, vector<8x20xbf16>, vector<8x8xf32> -> vector<8x8xf32>
      %46 = vector.broadcast %42 : vector<8x1xf32> to vector<8x8xf32>
      %47 = arith.mulf %46, %45 : vector<8x8xf32>
      %48 = vector.extract_strided_slice %47 {offsets = [0, 0], sizes = [8, 4], strides = [1, 1]} : vector<8x8xf32> to vector<8x4xf32>
      %c0_31 = arith.constant 0 : index
      %c0_32 = arith.constant 0 : index
      %49 = vector.load %arg14[%c0_31, %c0_32] : memref<8x8xf32, #tpu.memory_space<vmem>>, vector<8x4xf32>
      tpu.vector_store %arg14[%c0_31, %c0_32], %48 {strides = array<i32>} : memref<8x8xf32, #tpu.memory_space<vmem>>, vector<8x4xf32>,
      %50 = vector.extract_strided_slice %47 {offsets = [0, 4], sizes = [8, 4], strides = [1, 1]} : vector<8x8xf32> to vector<8x4xf32>
      %cst_33 = arith.constant 0.000000e+00 : f32
      %51 = vector.broadcast %cst_33 : f32 to vector<8x4xf32>
      %52 = arith.subf %51, %50 : vector<8x4xf32>
      %c0_34 = arith.constant 0 : index
      %c0_35 = arith.constant 0 : index
      %53 = vector.load %arg16[%c0_34, %c0_35] : memref<8x4xf32, #tpu.memory_space<vmem>>, vector<8x4xf32>
      tpu.vector_store %arg16[%c0_34, %c0_35], %52 {strides = array<i32>} : memref<8x4xf32, #tpu.memory_space<vmem>>, vector<8x4xf32>,
      %54 = vector.extract_strided_slice %21 {offsets = [0, 0], sizes = [8, 4], strides = [1, 1]} : vector<8x8xbf16> to vector<8x4xbf16>
      %c0_36 = arith.constant 0 : index
      %c0_37 = arith.constant 0 : index
      %55 = vector.load %arg7[%c0_36, %c0_37] : memref<4x16xbf16, #tpu.memory_space<vmem>>, vector<4x16xbf16>
      %cst_38 = arith.constant dense<0.000000e+00> : vector<8x16xf32>
      %56 = tpu.matmul %54, %55, %cst_38 {dimension_numbers = #tpu.dot_dimension_numbers<[1], [0], [0], [1], [0, 0, 1, 1], [], []>} : vector<8x4xbf16>, vector<4x16xbf16>, vector<8x16xf32> -> vector<8x16xf32>
      %c0_39 = arith.constant 0 : index
      %c0_40 = arith.constant 0 : index
      %57 = vector.load %arg8[%c0_39, %c0_40] : memref<1x16xf32, #tpu.memory_space<vmem>>, vector<1x16xf32>
      %58 = vector.broadcast %57 : vector<1x16xf32> to vector<8x16xf32>
      %59 = arith.addf %56, %58 : vector<8x16xf32>
      %60 = math.tanh %59 : vector<8x16xf32>
      %61 = arith.truncf %60 : vector<8x16xf32> to vector<8x16xbf16>
      %c0_41 = arith.constant 0 : index
      %c0_42 = arith.constant 0 : index
      %62 = vector.load %arg9[%c0_41, %c0_42] : memref<16x32xbf16, #tpu.memory_space<vmem>>, vector<16x32xbf16>
      %cst_43 = arith.constant dense<0.000000e+00> : vector<8x32xf32>
      %63 = tpu.matmul %61, %62, %cst_43 {dimension_numbers = #tpu.dot_dimension_numbers<[1], [0], [0], [1], [0, 0, 1, 1], [], []>} : vector<8x16xbf16>, vector<16x32xbf16>, vector<8x32xf32> -> vector<8x32xf32>
      %c0_44 = arith.constant 0 : index
      %c0_45 = arith.constant 0 : index
      %64 = vector.load %arg10[%c0_44, %c0_45] : memref<1x32xf32, #tpu.memory_space<vmem>>, vector<1x32xf32>
      %65 = vector.broadcast %64 : vector<1x32xf32> to vector<8x32xf32>
      %66 = arith.addf %63, %65 : vector<8x32xf32>
      %67 = math.tanh %66 : vector<8x32xf32>
      %c0_46 = arith.constant 0 : index
      %c0_47 = arith.constant 0 : index
      %68 = vector.load %arg15[%c0_46, %c0_47] : memref<8x32xf32, #tpu.memory_space<vmem>>, vector<8x32xf32>
      tpu.vector_store %arg15[%c0_46, %c0_47], %67 {strides = array<i32>} : memref<8x32xf32, #tpu.memory_space<vmem>>, vector<8x32xf32>,
    } else {
    }
    %c0 = arith.constant 0 : index
    %c0_1 = arith.constant 0 : index
    %3 = vector.load %arg15[%c0, %c0_1] : memref<8x32xf32, #tpu.memory_space<vmem>>, vector<8x32xf32>
    %4 = arith.truncf %3 : vector<8x32xf32> to vector<8x32xbf16>
    %c0_2 = arith.constant 0 : index
    %c0_3 = arith.constant 0 : index
    %5 = vector.load %arg11[%c0_2, %c0_3] : memref<32x16xbf16, #tpu.memory_space<vmem>>, vector<32x16xbf16>
    %cst = arith.constant dense<0.000000e+00> : vector<8x16xf32>
    %6 = tpu.matmul %4, %5, %cst {dimension_numbers = #tpu.dot_dimension_numbers<[1], [0], [0], [1], [0, 0, 1, 1], [], []>} : vector<8x32xbf16>, vector<32x16xbf16>, vector<8x16xf32> -> vector<8x16xf32>
    %c0_4 = arith.constant 0 : index
    %c0_5 = arith.constant 0 : index
    %7 = vector.load %arg12[%c0_4, %c0_5] : memref<1x16xf32, #tpu.memory_space<vmem>>, vector<1x16xf32>
    %8 = vector.broadcast %7 : vector<1x16xf32> to vector<8x16xf32>
    %9 = arith.addf %6, %8 : vector<8x16xf32>
    %10 = math.tanh %9 : vector<8x16xf32>
    %c0_6 = arith.constant 0 : index
    %c0_7 = arith.constant 0 : index
    %11 = vector.load %arg16[%c0_6, %c0_7] : memref<8x4xf32, #tpu.memory_space<vmem>>, vector<8x4xf32>
    %12 = arith.truncf %10 : vector<8x16xf32> to vector<8x16xbf16>
    %c0_8 = arith.constant 0 : index
    %c0_9 = arith.constant 0 : index
    %13 = vector.load %arg13[%c0_8, %c0_9] : memref<16x4xbf16, #tpu.memory_space<vmem>>, vector<16x4xbf16>
    %cst_10 = arith.constant dense<0.000000e+00> : vector<8x4xf32>
    %14 = tpu.matmul %12, %13, %cst_10 {dimension_numbers = #tpu.dot_dimension_numbers<[1], [0], [0], [1], [0, 0, 1, 1], [], []>} : vector<8x16xbf16>, vector<16x4xbf16>, vector<8x4xf32> -> vector<8x4xf32>
    %15 = arith.addf %11, %14 : vector<8x4xf32>
    %c0_11 = arith.constant 0 : index
    %c0_12 = arith.constant 0 : index
    %16 = vector.load %arg16[%c0_11, %c0_12] : memref<8x4xf32, #tpu.memory_space<vmem>>, vector<8x4xf32>
    tpu.vector_store %arg16[%c0_11, %c0_12], %15 {strides = array<i32>} : memref<8x4xf32, #tpu.memory_space<vmem>>, vector<8x4xf32>,
    %c0_i32_13 = arith.constant 0 : i32
    %17 = arith.cmpi eq, %arg1, %c0_i32_13 : i32
    %18 = arith.extui %17 : i1 to i32
    %c0_i32_14 = arith.constant 0 : i32
    %19 = arith.cmpi ne, %18, %c0_i32_14 : i32
    scf.if %19 {
      %c0_15 = arith.constant 0 : index
      %c0_16 = arith.constant 0 : index
      %20 = vector.load %arg16[%c0_15, %c0_16] : memref<8x4xf32, #tpu.memory_space<vmem>>, vector<8x4xf32>
      %c0_17 = arith.constant 0 : index
      %c4 = arith.constant 4 : index
      %21 = vector.load %arg14[%c0_17, %c4] : memref<8x8xf32, #tpu.memory_space<vmem>>, vector<8x4xf32>
      tpu.vector_store %arg14[%c0_17, %c4], %20 {strides = array<i32>} : memref<8x8xf32, #tpu.memory_space<vmem>>, vector<8x4xf32>,
    } else {
    }
    return
  }
  func.func @transform_0(%arg0: i32, %arg1: i32) -> (i32, i32) {
    %c0_i32 = arith.constant 0 : i32
    %c0_i32_0 = arith.constant 0 : i32
    return %arg0, %c0_i32 : i32, i32
  }
  func.func @transform_1(%arg0: i32, %arg1: i32) -> (i32, i32) {
    %c0_i32 = arith.constant 0 : i32
    %c0_i32_0 = arith.constant 0 : i32
    %c0_i32_1 = arith.constant 0 : i32
    return %c0_i32, %c0_i32_0 : i32, i32
  }
  func.func @transform_2(%arg0: i32, %arg1: i32) -> (i32, i32) {
    %c0_i32 = arith.constant 0 : i32
    %c0_i32_0 = arith.constant 0 : i32
    %c0_i32_1 = arith.constant 0 : i32
    return %c0_i32, %c0_i32_0 : i32, i32
  }
  func.func @transform_3(%arg0: i32, %arg1: i32) -> (i32, i32) {
    %c0_i32 = arith.constant 0 : i32
    %c0_i32_0 = arith.constant 0 : i32
    %c0_i32_1 = arith.constant 0 : i32
    return %c0_i32, %c0_i32_0 : i32, i32
  }
  func.func @transform_4(%arg0: i32, %arg1: i32) -> (i32, i32) {
    %c0_i32 = arith.constant 0 : i32
    %c0_i32_0 = arith.constant 0 : i32
    %c0_i32_1 = arith.constant 0 : i32
    return %c0_i32, %c0_i32_0 : i32, i32
  }
  func.func @transform_5(%arg0: i32, %arg1: i32) -> (i32, i32) {
    %c0_i32 = arith.constant 0 : i32
    %c0_i32_0 = arith.constant 0 : i32
    %c0_i32_1 = arith.constant 0 : i32
    return %c0_i32, %c0_i32_0 : i32, i32
  }
  func.func @transform_6(%arg0: i32, %arg1: i32) -> (i32, i32) {
    %c0_i32 = arith.constant 0 : i32
    %c0_i32_0 = arith.constant 0 : i32
    %c0_i32_1 = arith.constant 0 : i32
    return %c0_i32, %c0_i32_0 : i32, i32
  }
  func.func @transform_7(%arg0: i32, %arg1: i32) -> (i32, i32) {
    %c0_i32 = arith.constant 0 : i32
    %c0_i32_0 = arith.constant 0 : i32
    %c0_i32_1 = arith.constant 0 : i32
    return %c0_i32, %c0_i32_0 : i32, i32
  }
  func.func @transform_8(%arg0: i32, %arg1: i32) -> (i32, i32) {
    %c0_i32 = arith.constant 0 : i32
    %c0_i32_0 = arith.constant 0 : i32
    %c0_i32_1 = arith.constant 0 : i32
    return %c0_i32, %c0_i32_0 : i32, i32
  }
  func.func @transform_9(%arg0: i32, %arg1: i32) -> (i32, i32) {
    %c0_i32 = arith.constant 0 : i32
    %c0_i32_0 = arith.constant 0 : i32
    return %c0_i32, %arg1 : i32, i32
  }
  func.func @transform_10(%arg0: i32, %arg1: i32) -> (i32, i32) {
    %c0_i32 = arith.constant 0 : i32
    %c0_i32_0 = arith.constant 0 : i32
    return %c0_i32, %arg1 : i32, i32
  }
  func.func @transform_11(%arg0: i32, %arg1: i32) -> (i32, i32) {
    %c0_i32 = arith.constant 0 : i32
    %c0_i32_0 = arith.constant 0 : i32
    return %arg1, %c0_i32 : i32, i32
  }
  func.func @transform_12(%arg0: i32, %arg1: i32) -> (i32, i32) {
    %c0_i32 = arith.constant 0 : i32
    %c0_i32_0 = arith.constant 0 : i32
    return %arg0, %c0_i32 : i32, i32
  }
}

</mosaic_0001>

<llo_original>
// kernel: tpu_custom_call.1
$region0: #{tpu_custom_call.1}
  #allocation0 [shape = 'u32[]', space=smem, size = 0x4, offset = 0x4, fixed_abs, tag = 'smem constant byte address 0x4 - core index']
  #allocation1 [shape = 'u32[144,128]{1,0:T(1,128)}', space=vmem, size = 0x12000, scoped, tag = 'internal scratch']
  #allocation2 [shape = 'f32[8,32]{1,0:T(8,128)}', space=vmem, size = 0x1000, scoped, tag = 'scratch operand']
  #allocation3 [shape = 'f32[8,4]{1,0:T(8,128)}', space=vmem, size = 0x1000, scoped, tag = 'scratch operand']
  #allocation4 [shape = 'f32[1,1]{1,0:T(1,128)S(1)}', space=vmem, size = 0x200, scoped, tag = 'scoped memory for tpu_custom_call.1']
  %s0 = inlined_call_operand.hbm [shape: f32[8,8], index: 0, kind: input, shape index: {}]
  %s1 = inlined_call_operand.hbm [shape: bf16[8,20], index: 1, kind: input, shape index: {}]
  %s2 = inlined_call_operand.hbm [shape: f32[1,20], index: 2, kind: input, shape index: {}]
  %s3 = inlined_call_operand.hbm [shape: f32[1,20], index: 3, kind: input, shape index: {}]
  %s4 = inlined_call_operand.<no memory space> [shape: f32[1,1], index: 4, kind: input, shape index: {}]
  %s5 = inlined_call_operand.hbm [shape: bf16[4,16], index: 5, kind: input, shape index: {}]
  %s6 = inlined_call_operand.hbm [shape: f32[1,16], index: 6, kind: input, shape index: {}]
  %s7 = inlined_call_operand.hbm [shape: bf16[16,32], index: 7, kind: input, shape index: {}]
  %s8 = inlined_call_operand.hbm [shape: f32[1,32], index: 8, kind: input, shape index: {}]
  %s9 = inlined_call_operand.hbm [shape: bf16[32,16], index: 9, kind: input, shape index: {}]
  %s10 = inlined_call_operand.hbm [shape: f32[1,16], index: 10, kind: input, shape index: {}]
  %s11 = inlined_call_operand.hbm [shape: bf16[16,4], index: 11, kind: input, shape index: {}]
  %s12 = inlined_call_operand.hbm [shape: f32[8,8], index: 12, kind: output, shape index: {}]
  %s13 = sld [smem:[#allocation0]]
  $region110: #{tpu_custom_call.1} parent=0
    _
  %s15 = ssub.s32 1, %s13
  %s16 = scalar_select 0, %s15, %s13
  %v17 = vstv %s4
  %18 = vst [vmem:[#allocation4] sm:$0x1] %v17
  $region1: #{tpu_custom_call.1} parent=0
    #allocation5 [shape = 'u8[4096]{0}', space=vmem, size = 0x1000, scoped, tag = 'input window, operand 0, single buffered']
    #allocation6 [shape = 's32[1]{0}', space=sflag, size = 0x4, scoped, tag = 'scoped memory for tpu_custom_call.1']
    #allocation7 [shape = 's32[1]{0}', space=sflag, size = 0x4, scoped, tag = 'scoped memory for tpu_custom_call.1']
    #allocation8 [shape = 'u8[2048]{0}', space=vmem, size = 0x800, scoped, tag = 'input window, operand 1, single buffered']
    #allocation9 [shape = 's32[1]{0}', space=sflag, size = 0x4, scoped, tag = 'scoped memory for tpu_custom_call.1']
    #allocation10 [shape = 'u8[512]{0}', space=vmem, size = 0x400, scoped, tag = 'input window, operand 2, single buffered']
    #allocation11 [shape = 'u8[512]{0}', space=vmem, size = 0x400, scoped, tag = 'input window, operand 3, single buffered']
    #allocation12 [shape = 's32[1]{0}', space=sflag, size = 0x4, scoped, tag = 'scoped memory for tpu_custom_call.1']
    #allocation13 [shape = 'u8[1024]{0}', space=vmem, size = 0x400, scoped, tag = 'input window, operand 5, single buffered']
    #allocation14 [shape = 'u8[512]{0}', space=vmem, size = 0x400, scoped, tag = 'input window, operand 6, single buffered']
    #allocation15 [shape = 's32[1]{0}', space=sflag, size = 0x4, scoped, tag = 'scoped memory for tpu_custom_call.1']
    #allocation16 [shape = 'u8[4096]{0}', space=vmem, size = 0x1000, scoped, tag = 'input window, operand 7, single buffered']
    #allocation17 [shape = 'u8[512]{0}', space=vmem, size = 0x400, scoped, tag = 'input window, operand 8, single buffered']
    #allocation18 [shape = 's32[1]{0}', space=sflag, size = 0x4, scoped, tag = 'scoped memory for tpu_custom_call.1']
    #allocation19 [shape = 'u8[8192]{0}', space=vmem, size = 0x2000, scoped, tag = 'input window, operand 9, single buffered']
    #allocation20 [shape = 'u8[512]{0}', space=vmem, size = 0x400, scoped, tag = 'input window, operand 10, single buffered']
    #allocation21 [shape = 's32[1]{0}', space=sflag, size = 0x4, scoped, tag = 'scoped memory for tpu_custom_call.1']
    #allocation22 [shape = 'u8[4096]{0}', space=vmem, size = 0x1000, scoped, tag = 'input window, operand 11, single buffered']
    #allocation23 [shape = 'u8[4096]{0}', space=vmem, size = 0x1000, scoped, tag = 'output window, operand 0, single buffered']
    %19 = vsyncpa [#allocation6], 0
    %20 = vsyncpa [#allocation9], 0
    %21 = vsyncpa [#allocation12], 0
    %22 = vsyncpa [#allocation15], 0
    %23 = vsyncpa [#allocation18], 0
    %24 = vsyncpa [#allocation21], 0
    %25 = vsyncpa [#allocation7], 0
    // Predicated region
    $region2: #{tpu_custom_call.1} parent=1 // pred_check
      _
    $region3: #{tpu_custom_call.1} parent=1 // pred_check_branch
      %27 = sbr.rel (0) target = $region5
    $region4: #{tpu_custom_call.1} parent=1 // pred_region
      %s29 = ssub.s32 128, 128
      %30 = vsyncadd [#allocation6], %s29
      %s32 = sshll.u32 [#allocation5], 4
      %s33 = int_to_ptr.vmem [resolvable:$true] %s32
      %35 = dma.hbm_to_vmem [thread:$0]  %s0, 128, %s33, [#allocation6]
    $region5: #{tpu_custom_call.1} parent=1 // pred_fallthru
      _
    // Predicated region
    $region6: #{tpu_custom_call.1} parent=1 // pred_check
      _
    $region7: #{tpu_custom_call.1} parent=1 // pred_check_branch
      %37 = sbr.rel (0) target = $region9
    $region8: #{tpu_custom_call.1} parent=1 // pred_region
      %s39 = ssub.s32 64, 64
      %40 = vsyncadd [#allocation9], %s39
      %s42 = sshll.u32 [#allocation8], 4
      %s43 = int_to_ptr.vmem [resolvable:$true] %s42
      %45 = dma.hbm_to_vmem [thread:$0]  %s1, 64, %s43, [#allocation9]
    $region9: #{tpu_custom_call.1} parent=1 // pred_fallthru
      _
    // Predicated region
    $region10: #{tpu_custom_call.1} parent=1 // pred_check
      _
    $region11: #{tpu_custom_call.1} parent=1 // pred_check_branch
      %47 = sbr.rel (0) target = $region13
    $region12: #{tpu_custom_call.1} parent=1 // pred_region
      %s49 = ssub.s32 16, 16
      %50 = vsyncadd [#allocation9], %s49
      %s52 = sshll.u32 [#allocation10], 4
      %s53 = int_to_ptr.vmem [resolvable:$true] %s52
      %55 = dma.hbm_to_vmem [thread:$0]  %s2, 16, %s53, [#allocation9]
    $region13: #{tpu_custom_call.1} parent=1 // pred_fallthru
      _
    // Predicated region
    $region14: #{tpu_custom_call.1} parent=1 // pred_check
      _
    $region15: #{tpu_custom_call.1} parent=1 // pred_check_branch
      %57 = sbr.rel (0) target = $region17
    $region16: #{tpu_custom_call.1} parent=1 // pred_region
      %s59 = ssub.s32 16, 16
      %60 = vsyncadd [#allocation12], %s59
      %s62 = sshll.u32 [#allocation11], 4
      %s63 = int_to_ptr.vmem [resolvable:$true] %s62
      %65 = dma.hbm_to_vmem [thread:$0]  %s3, 16, %s63, [#allocation12]
    $region17: #{tpu_custom_call.1} parent=1 // pred_fallthru
      _
    // Predicated region
    $region18: #{tpu_custom_call.1} parent=1 // pred_check
      _
    $region19: #{tpu_custom_call.1} parent=1 // pred_check_branch
      %67 = sbr.rel (0) target = $region21
    $region20: #{tpu_custom_call.1} parent=1 // pred_region
      _
    $region21: #{tpu_custom_call.1} parent=1 // pred_fallthru
      _
    // Predicated region
    $region22: #{tpu_custom_call.1} parent=1 // pred_check
      _
    $region23: #{tpu_custom_call.1} parent=1 // pred_check_branch
      %69 = sbr.rel (0) target = $region25
    $region24: #{tpu_custom_call.1} parent=1 // pred_region
      %s71 = ssub.s32 32, 32
      %72 = vsyncadd [#allocation12], %s71
      %s74 = sshll.u32 [#allocation13], 4
      %s75 = int_to_ptr.vmem [resolvable:$true] %s74
      %77 = dma.hbm_to_vmem [thread:$0]  %s5, 32, %s75, [#allocation12]
    $region25: #{tpu_custom_call.1} parent=1 // pred_fallthru
      _
    // Predicated region
    $region26: #{tpu_custom_call.1} parent=1 // pred_check
      _
    $region27: #{tpu_custom_call.1} parent=1 // pred_check_branch
      %79 = sbr.rel (0) target = $region29
    $region28: #{tpu_custom_call.1} parent=1 // pred_region
      %s81 = ssub.s32 16, 16
      %82 = vsyncadd [#allocation15], %s81
      %s84 = sshll.u32 [#allocation14], 4
      %s85 = int_to_ptr.vmem [resolvable:$true] %s84
      %87 = dma.hbm_to_vmem [thread:$0]  %s6, 16, %s85, [#allocation15]
    $region29: #{tpu_custom_call.1} parent=1 // pred_fallthru
      _
    // Predicated region
    $region30: #{tpu_custom_call.1} parent=1 // pred_check
      _
    $region31: #{tpu_custom_call.1} parent=1 // pred_check_branch
      %89 = sbr.rel (0) target = $region33
    $region32: #{tpu_custom_call.1} parent=1 // pred_region
      %s91 = ssub.s32 128, 128
      %92 = vsyncadd [#allocation15], %s91
      %s93 = sshll.u32 [#allocation16], 4
      %s94 = int_to_ptr.vmem [resolvable:$true] %s93
      %99 = dma.hbm_to_vmem [thread:$0]  %s7, 128, %s94, [#allocation15], 64, 64, 4
    $region33: #{tpu_custom_call.1} parent=1 // pred_fallthru
      _
    // Predicated region
    $region34: #{tpu_custom_call.1} parent=1 // pred_check
      _
    $region35: #{tpu_custom_call.1} parent=1 // pred_check_branch
      %101 = sbr.rel (0) target = $region37
    $region36: #{tpu_custom_call.1} parent=1 // pred_region
      %s103 = ssub.s32 16, 16
      %104 = vsyncadd [#allocation18], %s103
      %s106 = sshll.u32 [#allocation17], 4
      %s107 = int_to_ptr.vmem [resolvable:$true] %s106
      %109 = dma.hbm_to_vmem [thread:$0]  %s8, 16, %s107, [#allocation18]
    $region37: #{tpu_custom_call.1} parent=1 // pred_fallthru
      _
    // Predicated region
    $region38: #{tpu_custom_call.1} parent=1 // pred_check
      _
    $region39: #{tpu_custom_call.1} parent=1 // pred_check_branch
      %111 = sbr.rel (0) target = $region41
    $region40: #{tpu_custom_call.1} parent=1 // pred_region
      %s113 = ssub.s32 256, 256
      %114 = vsyncadd [#allocation18], %s113
      %s115 = sshll.u32 [#allocation19], 4
      %s116 = int_to_ptr.vmem [resolvable:$true] %s115
      %121 = dma.hbm_to_vmem [thread:$0]  %s9, 256, %s116, [#allocation18], 64, 64, 4
    $region41: #{tpu_custom_call.1} parent=1 // pred_fallthru
      _
    // Predicated region
    $region42: #{tpu_custom_call.1} parent=1 // pred_check
      _
    $region43: #{tpu_custom_call.1} parent=1 // pred_check_branch
      %123 = sbr.rel (0) target = $region45
    $region44: #{tpu_custom_call.1} parent=1 // pred_region
      %s125 = ssub.s32 16, 16
      %126 = vsyncadd [#allocation21], %s125
      %s128 = sshll.u32 [#allocation20], 4
      %s129 = int_to_ptr.vmem [resolvable:$true] %s128
      %131 = dma.hbm_to_vmem [thread:$0]  %s10, 16, %s129, [#allocation21]
    $region45: #{tpu_custom_call.1} parent=1 // pred_fallthru
      _
    // Predicated region
    $region46: #{tpu_custom_call.1} parent=1 // pred_check
      _
    $region47: #{tpu_custom_call.1} parent=1 // pred_check_branch
      %133 = sbr.rel (0) target = $region49
    $region48: #{tpu_custom_call.1} parent=1 // pred_region
      %s135 = ssub.s32 128, 128
      %136 = vsyncadd [#allocation21], %s135
      %s137 = sshll.u32 [#allocation22], 4
      %s138 = int_to_ptr.vmem [resolvable:$true] %s137
      %143 = dma.hbm_to_vmem [thread:$0]  %s11, 128, %s138, [#allocation21], 64, 64, 4
    $region49: #{tpu_custom_call.1} parent=1 // pred_fallthru
      _
    // Predicated region
    $region50: #{tpu_custom_call.1} parent=1 // pred_check
      _
    $region51: #{tpu_custom_call.1} parent=1 // pred_check_branch
      %145 = sbr.rel (0) target = $region53
    $region52: #{tpu_custom_call.1} parent=1 // pred_region
      %146 = dma.done [#allocation6], 128
    $region53: #{tpu_custom_call.1} parent=1 // pred_fallthru
      _
    // Predicated region
    $region54: #{tpu_custom_call.1} parent=1 // pred_check
      _
    $region55: #{tpu_custom_call.1} parent=1 // pred_check_branch
      %148 = sbr.rel (0) target = $region57
    $region56: #{tpu_custom_call.1} parent=1 // pred_region
      %149 = dma.done [#allocation9], 64
    $region57: #{tpu_custom_call.1} parent=1 // pred_fallthru
      _
    // Predicated region
    $region58: #{tpu_custom_call.1} parent=1 // pred_check
      _
    $region59: #{tpu_custom_call.1} parent=1 // pred_check_branch
      %151 = sbr.rel (0) target = $region61
    $region60: #{tpu_custom_call.1} parent=1 // pred_region
      %152 = dma.done [#allocation9], 16
    $region61: #{tpu_custom_call.1} parent=1 // pred_fallthru
      _
    // Predicated region
    $region62: #{tpu_custom_call.1} parent=1 // pred_check
      _
    $region63: #{tpu_custom_call.1} parent=1 // pred_check_branch
      %154 = sbr.rel (0) target = $region65
    $region64: #{tpu_custom_call.1} parent=1 // pred_region
      %155 = dma.done [#allocation12], 16
    $region65: #{tpu_custom_call.1} parent=1 // pred_fallthru
      _
    // Predicated region
    $region66: #{tpu_custom_call.1} parent=1 // pred_check
      _
    $region67: #{tpu_custom_call.1} parent=1 // pred_check_branch
      %157 = sbr.rel (0) target = $region69
    $region68: #{tpu_custom_call.1} parent=1 // pred_region
      %158 = dma.done [#allocation12], 32
    $region69: #{tpu_custom_call.1} parent=1 // pred_fallthru
      _
    // Predicated region
    $region70: #{tpu_custom_call.1} parent=1 // pred_check
      _
    $region71: #{tpu_custom_call.1} parent=1 // pred_check_branch
      %160 = sbr.rel (0) target = $region73
    $region72: #{tpu_custom_call.1} parent=1 // pred_region
      %161 = dma.done [#allocation15], 16
    $region73: #{tpu_custom_call.1} parent=1 // pred_fallthru
      _
    // Predicated region
    $region74: #{tpu_custom_call.1} parent=1 // pred_check
      _
    $region75: #{tpu_custom_call.1} parent=1 // pred_check_branch
      %163 = sbr.rel (0) target = $region77
    $region76: #{tpu_custom_call.1} parent=1 // pred_region
      %164 = dma.done [#allocation15], 128
    $region77: #{tpu_custom_call.1} parent=1 // pred_fallthru
      _
    // Predicated region
    $region78: #{tpu_custom_call.1} parent=1 // pred_check
      _
    $region79: #{tpu_custom_call.1} parent=1 // pred_check_branch
      %166 = sbr.rel (0) target = $region81
    $region80: #{tpu_custom_call.1} parent=1 // pred_region
      %167 = dma.done [#allocation18], 16
    $region81: #{tpu_custom_call.1} parent=1 // pred_fallthru
      _
    // Predicated region
    $region82: #{tpu_custom_call.1} parent=1 // pred_check
      _
    $region83: #{tpu_custom_call.1} parent=1 // pred_check_branch
      %169 = sbr.rel (0) target = $region85
    $region84: #{tpu_custom_call.1} parent=1 // pred_region
      %170 = dma.done [#allocation18], 256
    $region85: #{tpu_custom_call.1} parent=1 // pred_fallthru
      _
    // Predicated region
    $region86: #{tpu_custom_call.1} parent=1 // pred_check
      _
    $region87: #{tpu_custom_call.1} parent=1 // pred_check_branch
      %172 = sbr.rel (0) target = $region89
    $region88: #{tpu_custom_call.1} parent=1 // pred_region
      %173 = dma.done [#allocation21], 16
    $region89: #{tpu_custom_call.1} parent=1 // pred_fallthru
      _
    // Predicated region
    $region90: #{tpu_custom_call.1} parent=1 // pred_check
      _
    $region91: #{tpu_custom_call.1} parent=1 // pred_check_branch
      %175 = sbr.rel (0) target = $region93
    $region92: #{tpu_custom_call.1} parent=1 // pred_region
      %176 = dma.done [#allocation21], 128
    $region93: #{tpu_custom_call.1} parent=1 // pred_fallthru
      _
    %p178 = scmp.eq.s32.totalorder 0, 0
    // Predicated region
    $region94: #{tpu_custom_call.1} parent=1 // pred_check
      %p179 = pneg %p178
    $region95: #{tpu_custom_call.1} parent=1 // pred_check_branch
      %181 = sbr.rel (%p179) target = $region97
    $region96: #{tpu_custom_call.1} parent=1 // pred_region
      %v182 = vld [vmem:[#allocation5] sm:$0xff]
      %v183 = vpack.c.bf16 %v182, %v182
      %v184 = vld [vmem:[#allocation8] sm:$0xf]
      %v185 = vld [vmem:[#allocation10] sm:$0x1]
      %v187 = vlaneseq
      %v188 = vshrl.u32 %v187, 7
      %v189 = vsub.s32 0, %v188
      %v190 = vrot.slane %v185, %v189
      %vm192 = vcmask 64512
      %v194 = vsel %vm192, %v183, 0
      %vm196 = vcmask 1043456
      %v198 = vsel %vm196, %v184, 0
      %200 = vmatprep.subr.bf16.mxu0 0
      %201 = vmatpush1.bf16.msra.mxu0 %v198
      %202 = vmatprep.subr.bf16.mxu0 0
      %203 = vmatpush1.bf16.msra.mxu0 0
      %204 = vmatprep.subr.bf16.mxu0 0
      %205 = vmatpush1.bf16.msra.mxu0 0
      %206 = vmatprep.subr.bf16.mxu0 0
      %207 = vmatpush1.bf16.msra.mxu0 0
      %208 = vmatprep.subr.bf16.mxu0 0
      %209 = vmatpush1.bf16.msra.mxu0 0
      %210 = vmatprep.subr.bf16.mxu0 0
      %211 = vmatpush1.bf16.msra.mxu0 0
      %212 = vmatprep.subr.bf16.mxu0 0
      %213 = vmatpush1.bf16.msra.mxu0 0
      %214 = vmatprep.subr.bf16.mxu0 0
      %215 = vmatpush1.bf16.msra.mxu0 0
      %216 = vmatprep.subr.bf16.mxu0 0
      %217 = vmatpush1.bf16.msra.mxu0 0
      %218 = vmatprep.subr.bf16.mxu0 0
      %219 = vmatpush1.bf16.msra.mxu0 0
      %220 = vmatprep.subr.bf16.mxu0 0
      %221 = vmatpush1.bf16.msra.mxu0 0
      %222 = vmatprep.subr.bf16.mxu0 0
      %223 = vmatpush1.bf16.msra.mxu0 0
      %224 = vmatprep.subr.bf16.mxu0 0
      %225 = vmatpush1.bf16.msra.mxu0 0
      %226 = vmatprep.subr.bf16.mxu0 0
      %227 = vmatpush1.bf16.msra.mxu0 0
      %228 = vmatprep.subr.bf16.mxu0 0
      %229 = vmatpush1.bf16.msra.mxu0 0
      %230 = vmatprep.subr.bf16.mxu0 0
      %231 = vmatpush1.bf16.msra.mxu0 0
      %232 = vmatprep.mubr.bf16.mxu0 0
      %233 = vmatmul.mubr.bf16.gmra.mrb[0].mxu0 %v194
      %v234 = vpop.f32.mrb[0].mxu0
      %v235 = vadd.f32 %v190, %v234
      %v236 = vpop.f32.mrb[0].mxu0
      %v237 = vpop.f32.mrb[0].mxu0
      %v238 = vpop.f32.mrb[0].mxu0
      %239 = vdwg.mxu0
      %v240 = vtanh.pop %v235
      %v241 = vld [vmem:[#allocation11] sm:$0x1]
      %v243 = vlaneseq
      %v244 = vshrl.u32 %v243, 7
      %v245 = vsub.s32 0, %v244
      %v246 = vrot.slane %v241, %v245
      %v248 = vmul.f32 %v240, %v246
      %vm249 = vcmask 162816
      %v250 = vsel %vm249, %v248, 0.0
      %251 = vadd.xlane.f32.xlu0 %v250
      %v252 = vpop.xlane.xlu0 %251
      %v253 = vld [vmem:[#allocation4] sm:$0x1]
      %v255 = vlaneseq
      %v256 = vshrl.u32 %v255, 7
      %v257 = vsub.s32 0, %v256
      %v258 = vrot.slane %v253, %v257
      %v260 = vadd.f32 %v252, %v258
      %v261 = vtanh.pop %v260
      %v262 = vmul.f32 %v240, %v248
      %v263 = vsub.f32 %v246, %v262
      %v264 = vmul.f32 %v261, %v261
      %v265 = vsub.f32 1.0, %v264
      %v266 = vpack.c.bf16 %v263, %v263
      %v268 = vsel %vm249, %v266, 0
      %v270 = vsel %vm249, %v184, 0
      %272 = vmatprep.subr.bf16.mxu0 0
      %273 = vmatpush1.bf16.xpose.msra.mxu0 %v270
      %274 = vmatprep.subr.bf16.mxu0 0
      %275 = vmatpush1.bf16.xpose.msra.mxu0 0
      %276 = vmatprep.subr.bf16.mxu0 0
      %277 = vmatpush1.bf16.xpose.msra.mxu0 0
      %278 = vmatprep.subr.bf16.mxu0 0
      %279 = vmatpush1.bf16.xpose.msra.mxu0 0
      %280 = vmatprep.subr.bf16.mxu0 0
      %281 = vmatpush1.bf16.xpose.msra.mxu0 0
      %282 = vmatprep.subr.bf16.mxu0 0
      %283 = vmatpush1.bf16.xpose.msra.mxu0 0
      %284 = vmatprep.subr.bf16.mxu0 0
      %285 = vmatpush1.bf16.xpose.msra.mxu0 0
      %286 = vmatprep.subr.bf16.mxu0 0
      %287 = vmatpush1.bf16.xpose.msra.mxu0 0
      %288 = vmatprep.subr.bf16.mxu0 0
      %289 = vmatpush1.bf16.xpose.msra.mxu0 0
      %290 = vmatprep.subr.bf16.mxu0 0
      %291 = vmatpush1.bf16.xpose.msra.mxu0 0
      %292 = vmatprep.subr.bf16.mxu0 0
      %293 = vmatpush1.bf16.xpose.msra.mxu0 0
      %294 = vmatprep.subr.bf16.mxu0 0
      %295 = vmatpush1.bf16.xpose.msra.mxu0 0
      %296 = vmatprep.subr.bf16.mxu0 0
      %297 = vmatpush1.bf16.xpose.msra.mxu0 0
      %298 = vmatprep.subr.bf16.mxu0 0
      %299 = vmatpush1.bf16.xpose.msra.mxu0 0
      %300 = vmatprep.subr.bf16.mxu0 0
      %301 = vmatpush1.bf16.xpose.msra.mxu0 0
      %302 = vmatprep.subr.bf16.mxu0 0
      %303 = vmatpush1.bf16.xpose.msra.mxu0 0
      %304 = vmatprep.mubr.bf16.mxu0 0
      %305 = vmatmul.mubr.bf16.gmra.mrb[0].mxu0 %v268
      %v306 = vpop.f32.mrb[0].mxu0
      %v307 = vadd.f32 0.0, %v306
      %v308 = vpop.f32.mrb[0].mxu0
      %v309 = vpop.f32.mrb[0].mxu0
      %v310 = vpop.f32.mrb[0].mxu0
      %311 = vdwg.mxu0
      %313 = vset.pattern.permute.xlu0 0
      %314 = vperm.xlu0 %313, %v265
      %v315 = vpop.permute.xlu0 %314
      %v317 = vmul.f32 %v315, %v307
      %vm318 = vcmask 31744
      %319 = vst.msk [vmem:[#allocation23] sm:$0xff] %vm318, %v317
      %v320 = vsub.f32 0.0, %v317
      %322 = vrot.lane.b32.xlu0 %v320, 124
      %v323 = vpop.permute.xlu0 %322
      %325 = vst.msk [vmem:[#allocation3] sm:$0xff] %vm318, %v323
      %v326 = vld [vmem:[#allocation13] sm:$0x3]
      %v327 = vld [vmem:[#allocation14] sm:$0x1]
      %v329 = vlaneseq
      %v330 = vshrl.u32 %v329, 7
      %v331 = vsub.s32 0, %v330
      %v332 = vrot.slane %v327, %v331
      %v334 = vsel %vm318, %v183, 0
      %vm336 = vcmask 1041408
      %v338 = vsel %vm336, %v326, 0
      %340 = vmatprep.subr.bf16.mxu0 0
      %341 = vmatpush1.bf16.msra.mxu0 %v338
      %342 = vmatprep.subr.bf16.mxu0 0
      %343 = vmatpush1.bf16.msra.mxu0 0
      %344 = vmatprep.subr.bf16.mxu0 0
      %345 = vmatpush1.bf16.msra.mxu0 0
      %346 = vmatprep.subr.bf16.mxu0 0
      %347 = vmatpush1.bf16.msra.mxu0 0
      %348 = vmatprep.subr.bf16.mxu0 0
      %349 = vmatpush1.bf16.msra.mxu0 0
      %350 = vmatprep.subr.bf16.mxu0 0
      %351 = vmatpush1.bf16.msra.mxu0 0
      %352 = vmatprep.subr.bf16.mxu0 0
      %353 = vmatpush1.bf16.msra.mxu0 0
      %354 = vmatprep.subr.bf16.mxu0 0
      %355 = vmatpush1.bf16.msra.mxu0 0
      %356 = vmatprep.subr.bf16.mxu0 0
      %357 = vmatpush1.bf16.msra.mxu0 0
      %358 = vmatprep.subr.bf16.mxu0 0
      %359 = vmatpush1.bf16.msra.mxu0 0
      %360 = vmatprep.subr.bf16.mxu0 0
      %361 = vmatpush1.bf16.msra.mxu0 0
      %362 = vmatprep.subr.bf16.mxu0 0
      %363 = vmatpush1.bf16.msra.mxu0 0
      %364 = vmatprep.subr.bf16.mxu0 0
      %365 = vmatpush1.bf16.msra.mxu0 0
      %366 = vmatprep.subr.bf16.mxu0 0
      %367 = vmatpush1.bf16.msra.mxu0 0
      %368 = vmatprep.subr.bf16.mxu0 0
      %369 = vmatpush1.bf16.msra.mxu0 0
      %370 = vmatprep.subr.bf16.mxu0 0
      %371 = vmatpush1.bf16.msra.mxu0 0
      %372 = vmatprep.mubr.bf16.mxu0 0
      %373 = vmatmul.mubr.bf16.gmra.mrb[0].mxu0 %v334
      %v374 = vpop.f32.mrb[0].mxu0
      %v375 = vadd.f32 %v332, %v374
      %v376 = vpop.f32.mrb[0].mxu0
      %v377 = vpop.f32.mrb[0].mxu0
      %v378 = vpop.f32.mrb[0].mxu0
      %379 = vdwg.mxu0
      %v380 = vtanh.pop %v375
      %v381 = vpack.c.bf16 %v380, %v380
      %v382 = vld [vmem:[#allocation16] sm:$0xf]
      %v383 = vld [vmem:[#allocation16 + $0x4] sm:$0xf]
      %v384 = vld [vmem:[#allocation17] sm:$0x1]
      %v386 = vlaneseq
      %v387 = vshrl.u32 %v386, 7
      %v388 = vsub.s32 0, %v387
      %v389 = vrot.slane %v384, %v388
      %v393 = vunpack.c.l.b16 %v382
      %v394 = vunpack.c.l.b16 %v383
      %v395 = vpack.c.b16 %v394, %v393
      %vm397 = vcmask 130048
      %v399 = vsel %vm397, %v381, 0
      %401 = vmatprep.subr.bf16.mxu0 0
      %402 = vmatpush1.bf16.msra.mxu0 %v395
      %403 = vmatprep.subr.bf16.mxu0 0
      %404 = vmatpush1.bf16.msra.mxu0 0
      %405 = vmatprep.subr.bf16.mxu0 0
      %406 = vmatpush1.bf16.msra.mxu0 0
      %407 = vmatprep.subr.bf16.mxu0 0
      %408 = vmatpush1.bf16.msra.mxu0 0
      %409 = vmatprep.subr.bf16.mxu0 0
      %410 = vmatpush1.bf16.msra.mxu0 0
      %411 = vmatprep.subr.bf16.mxu0 0
      %412 = vmatpush1.bf16.msra.mxu0 0
      %413 = vmatprep.subr.bf16.mxu0 0
      %414 = vmatpush1.bf16.msra.mxu0 0
      %415 = vmatprep.subr.bf16.mxu0 0
      %416 = vmatpush1.bf16.msra.mxu0 0
      %417 = vmatprep.subr.bf16.mxu0 0
      %418 = vmatpush1.bf16.msra.mxu0 0
      %419 = vmatprep.subr.bf16.mxu0 0
      %420 = vmatpush1.bf16.msra.mxu0 0
      %421 = vmatprep.subr.bf16.mxu0 0
      %422 = vmatpush1.bf16.msra.mxu0 0
      %423 = vmatprep.subr.bf16.mxu0 0
      %424 = vmatpush1.bf16.msra.mxu0 0
      %425 = vmatprep.subr.bf16.mxu0 0
      %426 = vmatpush1.bf16.msra.mxu0 0
      %427 = vmatprep.subr.bf16.mxu0 0
      %428 = vmatpush1.bf16.msra.mxu0 0
      %429 = vmatprep.subr.bf16.mxu0 0
      %430 = vmatpush1.bf16.msra.mxu0 0
      %431 = vmatprep.subr.bf16.mxu0 0
      %432 = vmatpush1.bf16.msra.mxu0 0
      %433 = vmatprep.mubr.bf16.mxu0 0
      %434 = vmatmul.mubr.bf16.gmra.mrb[0].mxu0 %v399
      %v435 = vpop.f32.mrb[0].mxu0
      %v436 = vadd.f32 %v389, %v435
      %v437 = vpop.f32.mrb[0].mxu0
      %v438 = vpop.f32.mrb[0].mxu0
      %v439 = vpop.f32.mrb[0].mxu0
      %440 = vdwg.mxu0
      %v441 = vtanh.pop %v436
      %vm442 = vcmask 261120
      %443 = vst.msk [vmem:[#allocation2] sm:$0xff] %vm442, %v441
    $region97: #{tpu_custom_call.1} parent=1 // pred_fallthru
      _
    %v444 = vld [vmem:[#allocation2] sm:$0xff]
    %v445 = vpack.c.bf16 %v444, %v444
    %v446 = vld [vmem:[#allocation19] sm:$0xf]
    %v447 = vld [vmem:[#allocation19 + $0x4] sm:$0xf]
    %v448 = vld [vmem:[#allocation19 + $0x8] sm:$0xf]
    %v449 = vld [vmem:[#allocation19 + $0xc] sm:$0xf]
    %v450 = vld [vmem:[#allocation20] sm:$0x1]
    %v452 = vlaneseq
    %v453 = vshrl.u32 %v452, 7
    %v454 = vsub.s32 0, %v453
    %v455 = vrot.slane %v450, %v454
    %v461 = vunpack.c.l.b16 %v446
    %v462 = vunpack.c.l.b16 %v447
    %v463 = vunpack.c.l.b16 %v448
    %v464 = vunpack.c.l.b16 %v449
    %v465 = vpack.c.b16 %v462, %v461
    %v466 = vpack.c.b16 %v464, %v463
    %vm469 = vcmask 261120
    %v471 = vsel %vm469, %v445, 0
    %473 = vmatprep.subr.bf16.mxu0 0
    %474 = vmatpush1.bf16.msra.mxu0 %v465
    %475 = vmatprep.subr.bf16.mxu0 0
    %476 = vmatpush1.bf16.msra.mxu0 %v466
    %477 = vmatprep.subr.bf16.mxu0 0
    %478 = vmatpush1.bf16.msra.mxu0 0
    %479 = vmatprep.subr.bf16.mxu0 0
    %480 = vmatpush1.bf16.msra.mxu0 0
    %481 = vmatprep.subr.bf16.mxu0 0
    %482 = vmatpush1.bf16.msra.mxu0 0
    %483 = vmatprep.subr.bf16.mxu0 0
    %484 = vmatpush1.bf16.msra.mxu0 0
    %485 = vmatprep.subr.bf16.mxu0 0
    %486 = vmatpush1.bf16.msra.mxu0 0
    %487 = vmatprep.subr.bf16.mxu0 0
    %488 = vmatpush1.bf16.msra.mxu0 0
    %489 = vmatprep.subr.bf16.mxu0 0
    %490 = vmatpush1.bf16.msra.mxu0 0
    %491 = vmatprep.subr.bf16.mxu0 0
    %492 = vmatpush1.bf16.msra.mxu0 0
    %493 = vmatprep.subr.bf16.mxu0 0
    %494 = vmatpush1.bf16.msra.mxu0 0
    %495 = vmatprep.subr.bf16.mxu0 0
    %496 = vmatpush1.bf16.msra.mxu0 0
    %497 = vmatprep.subr.bf16.mxu0 0
    %498 = vmatpush1.bf16.msra.mxu0 0
    %499 = vmatprep.subr.bf16.mxu0 0
    %500 = vmatpush1.bf16.msra.mxu0 0
    %501 = vmatprep.subr.bf16.mxu0 0
    %502 = vmatpush1.bf16.msra.mxu0 0
    %503 = vmatprep.subr.bf16.mxu0 0
    %504 = vmatpush1.bf16.msra.mxu0 0
    %505 = vmatprep.mubr.bf16.mxu0 0
    %506 = vmatmul.mubr.bf16.gmra.mrb[0].mxu0 %v471
    %v507 = vpop.f32.mrb[0].mxu0
    %v508 = vadd.f32 %v455, %v507
    %v509 = vpop.f32.mrb[0].mxu0
    %v510 = vpop.f32.mrb[0].mxu0
    %v511 = vpop.f32.mrb[0].mxu0
    %512 = vdwg.mxu0
    %v513 = vtanh.pop %v508
    %v514 = vld [vmem:[#allocation3] sm:$0xff]
    %v515 = vpack.c.bf16 %v513, %v513
    %v516 = vld [vmem:[#allocation22] sm:$0xf]
    %v517 = vld [vmem:[#allocation22 + $0x4] sm:$0xf]
    %v520 = vunpack.c.l.b16 %v516
    %v521 = vunpack.c.l.b16 %v517
    %v522 = vpack.c.b16 %v521, %v520
    %vm524 = vcmask 130048
    %v526 = vsel %vm524, %v515, 0
    %528 = vmatprep.subr.bf16.mxu0 0
    %529 = vmatpush1.bf16.msra.mxu0 %v522
    %530 = vmatprep.subr.bf16.mxu0 0
    %531 = vmatpush1.bf16.msra.mxu0 0
    %532 = vmatprep.subr.bf16.mxu0 0
    %533 = vmatpush1.bf16.msra.mxu0 0
    %534 = vmatprep.subr.bf16.mxu0 0
    %535 = vmatpush1.bf16.msra.mxu0 0
    %536 = vmatprep.subr.bf16.mxu0 0
    %537 = vmatpush1.bf16.msra.mxu0 0
    %538 = vmatprep.subr.bf16.mxu0 0
    %539 = vmatpush1.bf16.msra.mxu0 0
    %540 = vmatprep.subr.bf16.mxu0 0
    %541 = vmatpush1.bf16.msra.mxu0 0
    %542 = vmatprep.subr.bf16.mxu0 0
    %543 = vmatpush1.bf16.msra.mxu0 0
    %544 = vmatprep.subr.bf16.mxu0 0
    %545 = vmatpush1.bf16.msra.mxu0 0
    %546 = vmatprep.subr.bf16.mxu0 0
    %547 = vmatpush1.bf16.msra.mxu0 0
    %548 = vmatprep.subr.bf16.mxu0 0
    %549 = vmatpush1.bf16.msra.mxu0 0
    %550 = vmatprep.subr.bf16.mxu0 0
    %551 = vmatpush1.bf16.msra.mxu0 0
    %552 = vmatprep.subr.bf16.mxu0 0
    %553 = vmatpush1.bf16.msra.mxu0 0
    %554 = vmatprep.subr.bf16.mxu0 0
    %555 = vmatpush1.bf16.msra.mxu0 0
    %556 = vmatprep.subr.bf16.mxu0 0
    %557 = vmatpush1.bf16.msra.mxu0 0
    %558 = vmatprep.subr.bf16.mxu0 0
    %559 = vmatpush1.bf16.msra.mxu0 0
    %560 = vmatprep.mubr.bf16.mxu0 0
    %561 = vmatmul.mubr.bf16.gmra.mrb[0].mxu0 %v526
    %v562 = vpop.f32.mrb[0].mxu0
    %v563 = vadd.f32 0.0, %v562
    %v564 = vpop.f32.mrb[0].mxu0
    %v565 = vpop.f32.mrb[0].mxu0
    %v566 = vpop.f32.mrb[0].mxu0
    %567 = vdwg.mxu0
    %v568 = vadd.f32 %v514, %v563
    %vm569 = vcmask 31744
    %570 = vst.msk [vmem:[#allocation3] sm:$0xff] %vm569, %v568
    // Predicated region
    $region98: #{tpu_custom_call.1} parent=1 // pred_check
      %p571 = pneg %p178
    $region99: #{tpu_custom_call.1} parent=1 // pred_check_branch
      %573 = sbr.rel (%p571) target = $region101
    $region100: #{tpu_custom_call.1} parent=1 // pred_region
      %v574 = vld [vmem:[#allocation3] sm:$0xff]
      %576 = vrot.lane.b32.xlu0 %v574, 4
      %v577 = vpop.permute.xlu0 %576
      %vm579 = vcmask 64544
      %580 = vst.msk [vmem:[#allocation23] sm:$0xff] %vm579, %v577
    $region101: #{tpu_custom_call.1} parent=1 // pred_fallthru
      _
    // Predicated region
    $region102: #{tpu_custom_call.1} parent=1 // pred_check
      _
    $region103: #{tpu_custom_call.1} parent=1 // pred_check_branch
      %582 = sbr.rel (0) target = $region105
    $region104: #{tpu_custom_call.1} parent=1 // pred_region
      %s584 = ssub.s32 128, 128
      %585 = vsyncadd [#allocation7], %s584
      %s587 = sshll.u32 [#allocation23], 4
      %s588 = int_to_ptr.vmem [resolvable:$true] %s587
      %590 = dma.vmem_to_hbm [thread:$0]  %s588, 128, %s12, [#allocation7]
    $region105: #{tpu_custom_call.1} parent=1 // pred_fallthru
      _
    // Predicated region
    $region106: #{tpu_custom_call.1} parent=1 // pred_check
      _
    $region107: #{tpu_custom_call.1} parent=1 // pred_check_branch
      %592 = sbr.rel (0) target = $region109
    $region108: #{tpu_custom_call.1} parent=1 // pred_region
      %593 = dma.done [#allocation7], 128
    $region109: #{tpu_custom_call.1} parent=1 // pred_fallthru
      _
    %594 = vsyncpa [#allocation6], 1
    %595 = vsyncpa [#allocation9], 1
    %596 = vsyncpa [#allocation12], 1
    %597 = vsyncpa [#allocation15], 1
    %598 = vsyncpa [#allocation18], 1
    %599 = vsyncpa [#allocation21], 1
    %600 = vsyncpa [#allocation7], 1

</llo_original>
